<compile_context>
chip_gen: v6e
topology: v6e:2x2x1
jax: 0.10.0
libtpu: 0.0.40
codegen_flags: <defaults>
</compile_context>

<pallas_src>
import functools

import jax
import jax.numpy as jnp
from jax import lax
from jax.experimental import pallas as pl
from jax.experimental.pallas import tpu as pltpu


def _unit_quaternion_kernel(x_ref, w_ref, b_ref, o_ref, *, standardize):
    # x_ref: (tm, D) native dtype; w_ref: (D, 4); b_ref: (1, 4) f32; o_ref: (tm, 4)
    # Linear: q = x @ W^T + b   (W already stored transposed as (D, 4)).
    q = jnp.dot(x_ref[...], w_ref[...], preferred_element_type=jnp.float32)
    q = q + b_ref[...].astype(jnp.float32)

    # F.normalize(q, dim=-1): q / max(||q||, 1e-12)  ==  q * rsqrt(max(||q||^2, 1e-24))
    ss = jnp.sum(q * q, axis=-1, keepdims=True)
    q = q * lax.rsqrt(jnp.maximum(ss, 1e-24))

    if standardize:
        # m = (q[..., :1] > 0); q = m ? q : -q   (q[0]==0 rows get negated, as in PyTorch)
        q = jnp.where(q[:, :1] > 0, q, -q)

    o_ref[...] = q.astype(o_ref.dtype)


def unit_quaternion(x, weight, bias, *, standardize=True, tm=1024):
    """x: (..., D); weight: (4, D) (PyTorch layout); bias: (4,). Returns (..., 4)."""
    *lead, D = x.shape
    x2d = x.reshape(-1, D)
    M = x2d.shape[0]

    # Shrink the row tile for small inputs; keep it a multiple of 8 (sublane).
    tm_eff = min(tm, ((M + 7) // 8) * 8)

    w_t = jnp.asarray(weight).T                        # (D, 4), keep native dtype
    b2d = jnp.asarray(bias).reshape(1, 4).astype(jnp.float32)

    kernel = functools.partial(_unit_quaternion_kernel, standardize=standardize)

    out = pl.pallas_call(
        kernel,
        out_shape=jax.ShapeDtypeStruct((M, 4), x.dtype),
        grid_spec=pltpu.PrefetchScalarGridSpec(
            num_scalar_prefetch=0,
            grid=(pl.cdiv(M, tm_eff),),                # partial edge block handled by Pallas
            in_specs=[
                pl.BlockSpec((tm_eff, D), lambda i: (i, 0)),   # streamed x tile
                pl.BlockSpec((D, 4), lambda i: (0, 0)),        # resident weight
                pl.BlockSpec((1, 4), lambda i: (0, 0)),        # resident bias
            ],
            out_specs=pl.BlockSpec((tm_eff, 4), lambda i: (i, 0)),
        ),
        compiler_params=pltpu.CompilerParams(
            dimension_semantics=("parallel",),         # shards the row axis across TCs on v7x
        ),
    )(x2d, w_t, b2d)

    return out.reshape(*lead, 4)


def unit_quaternion_ref(x, weight, bias, standardize=True):
    """Pure-JAX reference matching the PyTorch module."""
    q = jnp.einsum("...d,od->...o", x, weight) + bias
    norm = jnp.sqrt(jnp.sum(q * q, axis=-1, keepdims=True))
    q = q / jnp.maximum(norm, 1e-12)
    if standardize:
        m = (q[..., :1] > 0).astype(q.dtype)
        q = m * q - (1.0 - m) * q
    return q


if __name__ == "__main__":
    key = jax.random.PRNGKey(0)
    k_x, k_w, k_b = jax.random.split(key, 3)

    input_dims = 32
    batch, seq = 2, 8

    # Deterministic "parameter init" mimicking nn.Linear(input_dims, 4):
    # uniform(-1/sqrt(D), 1/sqrt(D)) for weight (4, D) and bias (4,).
    bound = 1.0 / (input_dims ** 0.5)
    weight = jax.random.uniform(k_w, (4, input_dims), jnp.float32, -bound, bound)
    bias = jax.random.uniform(k_b, (4,), jnp.float32, -bound, bound)

    x = jax.random.normal(k_x, (batch, seq, input_dims), jnp.float32)

    out = unit_quaternion(x, weight, bias, standardize=True)
    out = jax.block_until_ready(out)

    ref = unit_quaternion_ref(x, weight, bias, standardize=True)
    assert out.shape == (batch, seq, 4), out.shape
    assert jnp.allclose(out, ref, atol=1e-5, rtol=1e-5), "mismatch vs reference"
    # sanity: unit norm and positive real part
    assert jnp.allclose(jnp.linalg.norm(out, axis=-1), 1.0, atol=1e-5)
    assert bool(jnp.all(out[..., 0] >= 0.0))

    print("KERNEL_OK")
</pallas_src>

<mosaic_0001>
module attributes {stable_mosaic.version = 11 : i64} {
  func.func @_unit_quaternion_kernel(%arg0: i32, %arg1: memref<16x32xf32, #tpu.memory_space<vmem>>, %arg2: memref<32x4xf32, #tpu.memory_space<vmem>>, %arg3: memref<1x4xf32, #tpu.memory_space<vmem>>, %arg4: memref<16x4xf32, #tpu.memory_space<vmem>>) attributes {dimension_semantics = [#tpu.dimension_semantics<parallel>], iteration_bounds = array<i64: 1>, scalar_prefetch = 0 : i64, scratch_operands = 0 : i64, tpu.core_type = #tpu.core_type<tc>, window_params = [{transform_indices = @transform_0, window_bounds = array<i64: 16, 32>}, {pipeline_mode = #tpu.pipeline_mode<synchronous>, transform_indices = @transform_1, window_bounds = array<i64: 32, 4>}, {pipeline_mode = #tpu.pipeline_mode<synchronous>, transform_indices = @transform_2, window_bounds = array<i64: 1, 4>}, {transform_indices = @transform_3, window_bounds = array<i64: 16, 4>}]} {
    %c0 = arith.constant 0 : index
    %c0_0 = arith.constant 0 : index
    %0 = vector.load %arg1[%c0, %c0_0] : memref<16x32xf32, #tpu.memory_space<vmem>>, vector<16x32xf32>
    %c0_1 = arith.constant 0 : index
    %c0_2 = arith.constant 0 : index
    %1 = vector.load %arg2[%c0_1, %c0_2] : memref<32x4xf32, #tpu.memory_space<vmem>>, vector<32x4xf32>
    %cst = arith.constant dense<0.000000e+00> : vector<16x4xf32>
    %2 = tpu.matmul %0, %1, %cst {dimension_numbers = #tpu.dot_dimension_numbers<[1], [0], [0], [1], [0, 0, 1, 1], [], []>} : vector<16x32xf32>, vector<32x4xf32>, vector<16x4xf32> -> vector<16x4xf32>
    %c0_3 = arith.constant 0 : index
    %c0_4 = arith.constant 0 : index
    %3 = vector.load %arg3[%c0_3, %c0_4] : memref<1x4xf32, #tpu.memory_space<vmem>>, vector<1x4xf32>
    %4 = vector.broadcast %3 : vector<1x4xf32> to vector<16x4xf32>
    %5 = arith.addf %2, %4 : vector<16x4xf32>
    %6 = arith.mulf %5, %5 : vector<16x4xf32>
    %cst_5 = arith.constant dense<0.000000e+00> : vector<16xf32>
    %7 = vector.multi_reduction <add>, %6, %cst_5 [1] : vector<16x4xf32> to vector<16xf32>
    %8 = vector.shape_cast %7 : vector<16xf32> to vector<16x1xf32>
    %cst_6 = arith.constant 1.000000e-24 : f32
    %9 = vector.broadcast %cst_6 : f32 to vector<16x1xf32>
    %10 = arith.maximumf %8, %9 : vector<16x1xf32>
    %11 = math.rsqrt %10 : vector<16x1xf32>
    %12 = vector.broadcast %11 : vector<16x1xf32> to vector<16x4xf32>
    %13 = arith.mulf %5, %12 : vector<16x4xf32>
    %14 = vector.extract_strided_slice %13 {offsets = [0, 0], sizes = [16, 1], strides = [1, 1]} : vector<16x4xf32> to vector<16x1xf32>
    %cst_7 = arith.constant 0.000000e+00 : f32
    %15 = vector.broadcast %cst_7 : f32 to vector<16x1xf32>
    %16 = arith.cmpf ogt, %14, %15 : vector<16x1xf32>
    %cst_8 = arith.constant 0.000000e+00 : f32
    %17 = vector.broadcast %cst_8 : f32 to vector<16x4xf32>
    %18 = arith.subf %17, %13 : vector<16x4xf32>
    %19 = vector.shape_cast %16 : vector<16x1xi1> to vector<16x1xi1>
    %20 = vector.broadcast %19 : vector<16x1xi1> to vector<16x4xi1>
    %21 = arith.select %20, %13, %18 : vector<16x4xi1>, vector<16x4xf32>
    %c0_9 = arith.constant 0 : index
    %c0_10 = arith.constant 0 : index
    %22 = vector.load %arg4[%c0_9, %c0_10] : memref<16x4xf32, #tpu.memory_space<vmem>>, vector<16x4xf32>
    tpu.vector_store %arg4[%c0_9, %c0_10], %21 {strides = array<i32>} : memref<16x4xf32, #tpu.memory_space<vmem>>, vector<16x4xf32>,
    return
  }
  func.func @transform_0(%arg0: i32) -> (i32, i32) {
    %c0_i32 = arith.constant 0 : i32
    %c0_i32_0 = arith.constant 0 : i32
    return %arg0, %c0_i32 : i32, i32
  }
  func.func @transform_1(%arg0: i32) -> (i32, i32) {
    %c0_i32 = arith.constant 0 : i32
    %c0_i32_0 = arith.constant 0 : i32
    %c0_i32_1 = arith.constant 0 : i32
    return %c0_i32, %c0_i32_0 : i32, i32
  }
  func.func @transform_2(%arg0: i32) -> (i32, i32) {
    %c0_i32 = arith.constant 0 : i32
    %c0_i32_0 = arith.constant 0 : i32
    %c0_i32_1 = arith.constant 0 : i32
    return %c0_i32, %c0_i32_0 : i32, i32
  }
  func.func @transform_3(%arg0: i32) -> (i32, i32) {
    %c0_i32 = arith.constant 0 : i32
    %c0_i32_0 = arith.constant 0 : i32
    return %arg0, %c0_i32 : i32, i32
  }
}

</mosaic_0001>

<llo_original>
// kernel: tpu_custom_call.1
$region0: #{tpu_custom_call.1}
  #allocation0 [shape = 'u32[]', space=smem, size = 0x4, offset = 0x4, fixed_abs, tag = 'smem constant byte address 0x4 - core index']
  #allocation1 [shape = 'u32[144,128]{1,0:T(1,128)}', space=vmem, size = 0x12000, scoped, tag = 'internal scratch']
  %s0 = inlined_call_operand.vmem [shape: f32[16,32], index: 0, kind: input, shape index: {}]
  %s1 = inlined_call_operand.vmem [shape: f32[32,4], index: 1, kind: input, shape index: {}]
  %s2 = inlined_call_operand.vmem [shape: f32[1,4], index: 2, kind: input, shape index: {}]
  %s3 = inlined_call_operand.vmem [shape: f32[16,4], index: 3, kind: output, shape index: {}]
  %s4 = sld [smem:[#allocation0]]
  $region22: #{tpu_custom_call.1} parent=0
    _
  %s6 = ssub.s32 1, %s4
  %s7 = scalar_select 0, %s6, %s4
  // Predicated region
  $region2: #{tpu_custom_call.1} parent=0 // pred_check
    _
  $region3: #{tpu_custom_call.1} parent=0 // pred_check_branch
    %9 = sbr.rel (0) target = $region5
  $region4: #{tpu_custom_call.1} parent=0 // pred_region
    _
  $region5: #{tpu_custom_call.1} parent=0 // pred_fallthru
    _
  // Predicated region
  $region6: #{tpu_custom_call.1} parent=0 // pred_check
    _
  $region7: #{tpu_custom_call.1} parent=0 // pred_check_branch
    %11 = sbr.rel (0) target = $region9
  $region8: #{tpu_custom_call.1} parent=0 // pred_region
    _
  $region9: #{tpu_custom_call.1} parent=0 // pred_fallthru
    _
  // Predicated region
  $region10: #{tpu_custom_call.1} parent=0 // pred_check
    _
  $region11: #{tpu_custom_call.1} parent=0 // pred_check_branch
    %13 = sbr.rel (0) target = $region13
  $region12: #{tpu_custom_call.1} parent=0 // pred_region
    _
  $region13: #{tpu_custom_call.1} parent=0 // pred_fallthru
    _
  %v14 = vld [vmem:[%s0] sm:$0xff]
  %v15 = vld [vmem:[%s0 + $0x8] sm:$0xff]
  %v16 = vld [vmem:[%s1] sm:$0xff]
  %v17 = vld [vmem:[%s1 + $0x8] sm:$0xff]
  %v18 = vld [vmem:[%s1 + $0x10] sm:$0xff]
  %v19 = vld [vmem:[%s1 + $0x18] sm:$0xff]
  %v20 = vld [vmem:[%s2] sm:$0x1]
  %v22 = vlaneseq
  %v23 = vshrl.u32 %v22, 7
  %v24 = vsub.s32 0, %v23
  %v25 = vrot.slane %v20, %v24
  %vm27 = vcmask 261120
  %v29 = vsel %vm27, %v14, 0
  %v32 = vsel %vm27, %v15, 0
  %34 = vmatprep.subr.mxu0 0.0
  %35 = vmatpush1.msra.mxu0 0.0
  %36 = vmatprep.subr.mxu0 0.0
  %37 = vmatpush1.msra.mxu0 0.0
  %38 = vmatprep.subr.mxu0 0.0
  %39 = vmatpush1.msra.mxu0 0.0
  %40 = vmatprep.subr.mxu0 0.0
  %41 = vmatpush1.msra.mxu0 0.0
  %42 = vmatprep.subr.mxu0 0.0
  %43 = vmatpush1.msra.mxu0 0.0
  %44 = vmatprep.subr.mxu0 0.0
  %45 = vmatpush1.msra.mxu0 0.0
  %46 = vmatprep.subr.mxu0 0.0
  %47 = vmatpush1.msra.mxu0 0.0
  %48 = vmatprep.subr.mxu0 0.0
  %49 = vmatpush1.msra.mxu0 0.0
  %50 = vmatprep.subr.mxu0 0.0
  %51 = vmatpush1.msra.mxu0 0.0
  %52 = vmatprep.subr.mxu0 0.0
  %53 = vmatpush1.msra.mxu0 0.0
  %54 = vmatprep.subr.mxu0 0.0
  %55 = vmatpush1.msra.mxu0 0.0
  %56 = vmatprep.subr.mxu0 0.0
  %57 = vmatpush1.msra.mxu0 0.0
  %58 = vmatprep.subr.mxu0 0.0
  %59 = vmatpush1.msra.mxu0 %v19
  %60 = vmatprep.subr.mxu0 0.0
  %61 = vmatpush1.msra.mxu0 %v18
  %62 = vmatprep.subr.mxu0 0.0
  %63 = vmatpush1.msra.mxu0 %v17
  %64 = vmatprep.subr.mxu0 0.0
  %65 = vmatpush1.msra.mxu0 %v16
  %66 = vmatprep.subr.mxu0 0.0
  %67 = vmatpush2.msra.mxu0 0.0
  %68 = vmatprep.subr.mxu0 0.0
  %69 = vmatpush2.msra.mxu0 0.0
  %70 = vmatprep.subr.mxu0 0.0
  %71 = vmatpush2.msra.mxu0 0.0
  %72 = vmatprep.subr.mxu0 0.0
  %73 = vmatpush2.msra.mxu0 0.0
  %74 = vmatprep.subr.mxu0 0.0
  %75 = vmatpush2.msra.mxu0 0.0
  %76 = vmatprep.subr.mxu0 0.0
  %77 = vmatpush2.msra.mxu0 0.0
  %78 = vmatprep.subr.mxu0 0.0
  %79 = vmatpush2.msra.mxu0 0.0
  %80 = vmatprep.subr.mxu0 0.0
  %81 = vmatpush2.msra.mxu0 0.0
  %82 = vmatprep.subr.mxu0 0.0
  %83 = vmatpush2.msra.mxu0 0.0
  %84 = vmatprep.subr.mxu0 0.0
  %85 = vmatpush2.msra.mxu0 0.0
  %86 = vmatprep.subr.mxu0 0.0
  %87 = vmatpush2.msra.mxu0 0.0
  %88 = vmatprep.subr.mxu0 0.0
  %89 = vmatpush2.msra.mxu0 0.0
  %90 = vmatprep.subr.mxu0 0.0
  %91 = vmatpush2.msra.mxu0 0.0
  %92 = vmatprep.subr.mxu0 0.0
  %93 = vmatpush2.msra.mxu0 0.0
  %94 = vmatprep.subr.mxu0 0.0
  %95 = vmatpush2.msra.mxu0 0.0
  %96 = vmatprep.subr.mxu0 0.0
  %97 = vmatpush2.msra.mxu0 0.0
  %98 = vmatprep.mubr.f32.mxu0 0.0
  %99 = vmatmul.mubr.f32.gmra.mxu0 %v29
  %v100 = vpop.f32.mrf.mxu0
  %v101 = vadd.f32 %v25, %v100
  %v102 = vpop.f32.mrf.mxu0
  %103 = vmatprep.mubr.f32.mxu0 0.0
  %104 = vmatmul.mubr.f32.gmra.mxu0 %v32
  %v105 = vpop.f32.mrf.mxu0
  %v106 = vadd.f32 %v25, %v105
  %v107 = vpop.f32.mrf.mxu0
  %108 = vdwg.mxu0
  %v109 = vmul.f32 %v101, %v101
  %v110 = vmul.f32 %v106, %v106
  %vm111 = vcmask 31744
  %v112 = vsel %vm111, %v109, 0.0
  %113 = vadd.xlane.f32.xlu0 %v112
  %v114 = vpop.xlane.xlu0 %113
  %v115 = vsel %vm111, %v110, 0.0
  %116 = vadd.xlane.f32.xlu0 %v115
  %v117 = vpop.xlane.xlu0 %116
  %v118 = vmax.f32 %v114, 1e-24
  %v119 = vmax.f32 %v117, 1e-24
  %v120 = vrsqrt.pop %v118
  %v121 = vrsqrt.pop %v119
  %v122 = vmul.f32 %v101, %v120
  %v123 = vmul.f32 %v106, %v121
  %vm124 = vcmp.gt.f32.partialorder %v122, 0.0
  %vm125 = vcmp.gt.f32.partialorder %v123, 0.0
  %v126 = vsub.f32 0.0, %v122
  %v127 = vsub.f32 0.0, %v123
  %v128 = vsel %vm124, 1, 0
  %v129 = vsel %vm125, 1, 0
  %130 = vset.pattern.permute.xlu0 0
  %131 = vperm.xlu0 %130, %v128
  %v132 = vpop.permute.xlu0 %131
  %133 = vset.pattern.permute.xlu0 0
  %134 = vperm.xlu0 %133, %v129
  %v135 = vpop.permute.xlu0 %134
  %vm136 = vcmp.eq.s32.totalorder %v132, 1
  %vm137 = vcmp.eq.s32.totalorder %v135, 1
  %v138 = vsel %vm136, %v122, %v126
  %v139 = vsel %vm137, %v123, %v127
  %140 = vst.msk [vmem:[%s3] sm:$0xff] %vm111, %v138
  %141 = vst.msk [vmem:[%s3 + $0x8] sm:$0xff] %vm111, %v139
  // Predicated region
  $region14: #{tpu_custom_call.1} parent=0 // pred_check
    _
  $region15: #{tpu_custom_call.1} parent=0 // pred_check_branch
    %143 = sbr.rel (0) target = $region17
  $region16: #{tpu_custom_call.1} parent=0 // pred_region
    _
  $region17: #{tpu_custom_call.1} parent=0 // pred_fallthru
    _
  // Predicated region
  $region18: #{tpu_custom_call.1} parent=0 // pred_check
    _
  $region19: #{tpu_custom_call.1} parent=0 // pred_check_branch
    %145 = sbr.rel (0) target = $region21
  $region20: #{tpu_custom_call.1} parent=0 // pred_region
    _
  $region21: #{tpu_custom_call.1} parent=0 // pred_fallthru
    _

</llo_original>
